<compile_context>
chip_gen: v7x
topology: tpu7x:2x2x1
jax: 0.10.0
libtpu: 0.0.40
codegen_flags: <defaults>
</compile_context>

<pallas_src>
import jax
import jax.numpy as jnp
from jax.experimental import pallas as pl
from jax.experimental.pallas import tpu as pltpu

THRESHOLD = 1.0  # snntorch Leaky default
LANE = 128
SUBLANE = 8


def _round_up(n, m):
    return (n + m - 1) // m * m


def _snn_kernel(x_ref, w1_ref, b1_ref, w2_ref, b2_ref, mem2_ref):
    # Layer 1: fc1 + Leaky.  Initial membrane is 0 -> mem1 == cur1 (beta term
    # and reset-by-subtract contribute nothing on the first step).
    cur1 = jnp.dot(x_ref[...], w1_ref[...],
                   preferred_element_type=jnp.float32) + b1_ref[...]
    spk1 = (cur1 > THRESHOLD).astype(jnp.float32)

    # Layer 2: fc2 + Leaky (same zero-initial-membrane simplification).
    # mem2 == cur2; spk2 is recomputed cheaply in the wrapper on the sliced
    # (B, n_out) result, so only mem2 is written back (halves/shrinks the
    # dominant writeback stream).
    mem2_ref[...] = (jnp.dot(spk1, w2_ref[...],
                             preferred_element_type=jnp.float32) + b2_ref[...])


def prepare_params(w1, b1, w2, b2):
    """Pad / cast parameters ONCE (hoisted out of the per-call traced path).

    Inputs are pre-transposed nn.Linear params: w1 [n_inp, n_hid], b1 [n_hid]
    or [1, n_hid], w2 [n_hid, n_out], b2 [n_out] or [1, n_out].
    Only the hidden dimension is padded to a lane multiple (128); the input
    (16) and output (4) dims stay at full extent.  Zero padding is semantics
    preserving: padded hidden columns stay exactly 0 and never spike.
    """
    n_inp, n_hid = w1.shape
    assert w2.shape[0] == n_hid, "w2 must be [n_hid, n_out] (pre-transposed)"
    n_out = w2.shape[1]
    n_hid_p = _round_up(n_hid, LANE)

    f32 = jnp.float32
    w1p = jnp.pad(w1.astype(f32), ((0, 0), (0, n_hid_p - n_hid)))
    b1p = jnp.pad(b1.astype(f32).reshape(1, -1), ((0, 0), (0, n_hid_p - n_hid)))
    w2p = jnp.pad(w2.astype(f32), ((0, n_hid_p - n_hid), (0, 0)))
    b2p = b2.astype(f32).reshape(1, -1)
    assert b1p.shape == (1, n_hid_p) and b2p.shape == (1, n_out)
    return (w1p, b1p, w2p, b2p)


def _pick_batch_tile(b_p, batch_tile):
    """Pick a batch tile: large (amortize per-step overhead) but guaranteeing
    >= 2 grid steps when possible so v7x's two TensorCores both get work."""
    tb = min(_round_up(batch_tile, SUBLANE), b_p)
    if b_p > SUBLANE:
        tb = min(tb, _round_up(pl.cdiv(b_p, 2), SUBLANE))
    return max(tb, SUBLANE)


def snn_forward(x, params, leaky=None, *, batch_tile=1024):
    """Single-step SNN forward.  Returns ([mem2], [spk2]) like SNNNet.forward.

    `params` is the tuple from prepare_params().  `leaky` (beta) is accepted
    for API parity but is mathematically irrelevant for one timestep with zero
    initial membrane, so it is not passed to (or baked into) the kernel.
    """
    del leaky  # unused for a single step with mem_init = 0
    w1p, b1p, w2p, b2p = params
    B, n_inp = x.shape
    assert w1p.shape[0] == n_inp, "w1 must be [n_inp, n_hid] (pre-transposed)"
    n_hid_p = w1p.shape[1]
    n_out = w2p.shape[1]

    # Pad batch only (sublane granularity + divisibility by the batch tile).
    b_p = _round_up(B, SUBLANE)
    tb = _pick_batch_tile(b_p, batch_tile)
    b_p = _round_up(b_p, tb)
    xp = x.astype(jnp.float32)
    if b_p != B:
        xp = jnp.pad(xp, ((0, b_p - B), (0, 0)))
    grid = (b_p // tb,)

    out = pl.pallas_call(
        _snn_kernel,
        out_shape=jax.ShapeDtypeStruct((b_p, n_out), jnp.float32),
        grid=grid,
        in_specs=[
            # x tile: full-extent (unpadded) feature dim -> minimal input DMA.
            pl.BlockSpec((tb, n_inp), lambda i: (i, 0)),
            # Weights / biases: constant index_map -> resident across tiles.
            pl.BlockSpec((n_inp, n_hid_p), lambda i: (0, 0)),   # W1
            pl.BlockSpec((1, n_hid_p), lambda i: (0, 0)),       # b1
            pl.BlockSpec((n_hid_p, n_out), lambda i: (0, 0)),   # W2
            pl.BlockSpec((1, n_out), lambda i: (0, 0)),         # b2
        ],
        # Narrow mem2-only output (full-extent last dim): 32x less writeback
        # than the old padded [mem2 | spk2] slab.
        out_specs=pl.BlockSpec((tb, n_out), lambda i: (i, 0)),
        compiler_params=pltpu.CompilerParams(
            dimension_semantics=("parallel",)),
    )(xp, w1p, b1p, w2p, b2p)

    mem2 = out[:B]
    spk2 = (mem2 > THRESHOLD).astype(jnp.float32)   # tiny (B, 4) compare
    # PyTorch forward returns (mem2_rec, spk2_rec) -- lists of length 1.
    return [mem2], [spk2]


def init_params(key, n_inp, n_hid, n_out=4):
    """Deterministic init matching nn.Linear's U(-1/sqrt(fan_in), 1/sqrt(fan_in)).

    Stored pre-transposed as [in, out] (PyTorch Linear stores [out, in])."""
    k1, k2, k3, k4 = jax.random.split(key, 4)
    lim1 = 1.0 / jnp.sqrt(n_inp)
    lim2 = 1.0 / jnp.sqrt(n_hid)
    w1 = jax.random.uniform(k1, (n_inp, n_hid), jnp.float32, -lim1, lim1)
    b1 = jax.random.uniform(k2, (1, n_hid), jnp.float32, -lim1, lim1)
    w2 = jax.random.uniform(k3, (n_hid, n_out), jnp.float32, -lim2, lim2)
    b2 = jax.random.uniform(k4, (1, n_out), jnp.float32, -lim2, lim2)
    return w1, b1, w2, b2


if __name__ == "__main__":
    n_inp, n_hid, batch = 16, 32, 8
    leaky = 0.9

    key = jax.random.PRNGKey(0)
    kx, kp = jax.random.split(key)
    # x corresponds to the (B, n_inp) input of SNNNet.forward (before unsqueeze)
    x = jax.random.normal(kx, (batch, n_inp), jnp.float32) * 2.0

    w1, b1, w2, b2 = init_params(kp, n_inp, n_hid)
    params = prepare_params(w1, b1, w2, b2)   # padded ONCE, reused per call

    mem2_rec, spk2_rec = snn_forward(x, params, leaky)
    jax.block_until_ready(mem2_rec[0])
    jax.block_until_ready(spk2_rec[0])

    # Sanity-check against a plain-JAX reference of the same math.
    cur1 = x @ w1 + b1
    spk1 = (cur1 > THRESHOLD).astype(jnp.float32)
    cur2 = spk1 @ w2 + b2
    ref_mem2 = cur2
    ref_spk2 = (cur2 > THRESHOLD).astype(jnp.float32)
    assert mem2_rec[0].shape == (batch, 4)
    assert spk2_rec[0].shape == (batch, 4)
    assert jnp.allclose(mem2_rec[0], ref_mem2, atol=1e-5)
    assert jnp.array_equal(spk2_rec[0], ref_spk2)

    print("KERNEL_OK")
</pallas_src>

<mosaic_0001>
module attributes {stable_mosaic.version = 11 : i64} {
  func.func @_snn_kernel(%arg0: i32, %arg1: memref<8x16xf32, #tpu.memory_space<vmem>>, %arg2: memref<16x128xf32, #tpu.memory_space<vmem>>, %arg3: memref<1x128xf32, #tpu.memory_space<vmem>>, %arg4: memref<128x4xf32, #tpu.memory_space<vmem>>, %arg5: memref<1x4xf32, #tpu.memory_space<vmem>>, %arg6: memref<8x4xf32, #tpu.memory_space<vmem>>) attributes {dimension_semantics = [#tpu.dimension_semantics<parallel>], iteration_bounds = array<i64: 1>, scalar_prefetch = 0 : i64, scratch_operands = 0 : i64, tpu.core_type = #tpu.core_type<tc>, window_params = [{transform_indices = @transform_0, window_bounds = array<i64: 8, 16>}, {pipeline_mode = #tpu.pipeline_mode<synchronous>, transform_indices = @transform_1, window_bounds = array<i64: 16, 128>}, {pipeline_mode = #tpu.pipeline_mode<synchronous>, transform_indices = @transform_2, window_bounds = array<i64: 1, 128>}, {pipeline_mode = #tpu.pipeline_mode<synchronous>, transform_indices = @transform_3, window_bounds = array<i64: 128, 4>}, {pipeline_mode = #tpu.pipeline_mode<synchronous>, transform_indices = @transform_4, window_bounds = array<i64: 1, 4>}, {transform_indices = @transform_5, window_bounds = array<i64: 8, 4>}]} {
    %c0 = arith.constant 0 : index
    %c0_0 = arith.constant 0 : index
    %0 = vector.load %arg1[%c0, %c0_0] : memref<8x16xf32, #tpu.memory_space<vmem>>, vector<8x16xf32>
    %c0_1 = arith.constant 0 : index
    %c0_2 = arith.constant 0 : index
    %1 = vector.load %arg2[%c0_1, %c0_2] : memref<16x128xf32, #tpu.memory_space<vmem>>, vector<16x128xf32>
    %cst = arith.constant dense<0.000000e+00> : vector<8x128xf32>
    %2 = tpu.matmul %0, %1, %cst {dimension_numbers = #tpu.dot_dimension_numbers<[1], [0], [0], [1], [0, 0, 1, 1], [], []>} : vector<8x16xf32>, vector<16x128xf32>, vector<8x128xf32> -> vector<8x128xf32>
    %c0_3 = arith.constant 0 : index
    %c0_4 = arith.constant 0 : index
    %3 = vector.load %arg3[%c0_3, %c0_4] : memref<1x128xf32, #tpu.memory_space<vmem>>, vector<1x128xf32>
    %4 = vector.broadcast %3 : vector<1x128xf32> to vector<8x128xf32>
    %5 = arith.addf %2, %4 : vector<8x128xf32>
    %cst_5 = arith.constant 1.000000e+00 : f32
    %6 = vector.broadcast %cst_5 : f32 to vector<8x128xf32>
    %7 = arith.cmpf ogt, %5, %6 : vector<8x128xf32>
    %8 = arith.extui %7 : vector<8x128xi1> to vector<8x128xi32>
    %9 = arith.sitofp %8 : vector<8x128xi32> to vector<8x128xf32>
    %c0_6 = arith.constant 0 : index
    %c0_7 = arith.constant 0 : index
    %10 = vector.load %arg4[%c0_6, %c0_7] : memref<128x4xf32, #tpu.memory_space<vmem>>, vector<128x4xf32>
    %cst_8 = arith.constant dense<0.000000e+00> : vector<8x4xf32>
    %11 = tpu.matmul %9, %10, %cst_8 {dimension_numbers = #tpu.dot_dimension_numbers<[1], [0], [0], [1], [0, 0, 1, 1], [], []>} : vector<8x128xf32>, vector<128x4xf32>, vector<8x4xf32> -> vector<8x4xf32>
    %c0_9 = arith.constant 0 : index
    %c0_10 = arith.constant 0 : index
    %12 = vector.load %arg5[%c0_9, %c0_10] : memref<1x4xf32, #tpu.memory_space<vmem>>, vector<1x4xf32>
    %13 = vector.broadcast %12 : vector<1x4xf32> to vector<8x4xf32>
    %14 = arith.addf %11, %13 : vector<8x4xf32>
    %c0_11 = arith.constant 0 : index
    %c0_12 = arith.constant 0 : index
    %15 = vector.load %arg6[%c0_11, %c0_12] : memref<8x4xf32, #tpu.memory_space<vmem>>, vector<8x4xf32>
    tpu.vector_store %arg6[%c0_11, %c0_12], %14 {strides = array<i32>} : memref<8x4xf32, #tpu.memory_space<vmem>>, vector<8x4xf32>,
    return
  }
  func.func @transform_0(%arg0: i32) -> (i32, i32) {
    %c0_i32 = arith.constant 0 : i32
    %c0_i32_0 = arith.constant 0 : i32
    return %arg0, %c0_i32 : i32, i32
  }
  func.func @transform_1(%arg0: i32) -> (i32, i32) {
    %c0_i32 = arith.constant 0 : i32
    %c0_i32_0 = arith.constant 0 : i32
    %c0_i32_1 = arith.constant 0 : i32
    return %c0_i32, %c0_i32_0 : i32, i32
  }
  func.func @transform_2(%arg0: i32) -> (i32, i32) {
    %c0_i32 = arith.constant 0 : i32
    %c0_i32_0 = arith.constant 0 : i32
    %c0_i32_1 = arith.constant 0 : i32
    return %c0_i32, %c0_i32_0 : i32, i32
  }
  func.func @transform_3(%arg0: i32) -> (i32, i32) {
    %c0_i32 = arith.constant 0 : i32
    %c0_i32_0 = arith.constant 0 : i32
    %c0_i32_1 = arith.constant 0 : i32
    return %c0_i32, %c0_i32_0 : i32, i32
  }
  func.func @transform_4(%arg0: i32) -> (i32, i32) {
    %c0_i32 = arith.constant 0 : i32
    %c0_i32_0 = arith.constant 0 : i32
    %c0_i32_1 = arith.constant 0 : i32
    return %c0_i32, %c0_i32_0 : i32, i32
  }
  func.func @transform_5(%arg0: i32) -> (i32, i32) {
    %c0_i32 = arith.constant 0 : i32
    %c0_i32_0 = arith.constant 0 : i32
    return %arg0, %c0_i32 : i32, i32
  }
}

</mosaic_0001>

<llo_original>
// kernel: tpu_custom_call.1
$region0: #{tpu_custom_call.1}
  #allocation0 [shape = 'u32[]', space=smem, size = 0x4, offset = 0x4, fixed_abs, tag = 'smem constant byte address 0x4 - core index']
  #allocation1 [shape = 'u32[144,128]{1,0:T(1,128)}', space=vmem, size = 0x12000, scoped, tag = 'internal scratch']
  %s0 = inlined_call_operand.vmem [shape: f32[8,16], index: 0, kind: input, shape index: {}]
  %s1 = inlined_call_operand.vmem [shape: f32[16,128], index: 1, kind: input, shape index: {}]
  %s2 = inlined_call_operand.vmem [shape: f32[1,128], index: 2, kind: input, shape index: {}]
  %s3 = inlined_call_operand.vmem [shape: f32[128,4], index: 3, kind: input, shape index: {}]
  %s4 = inlined_call_operand.vmem [shape: f32[1,4], index: 4, kind: input, shape index: {}]
  %s5 = inlined_call_operand.vmem [shape: f32[8,4], index: 5, kind: output, shape index: {}]
  %s6 = sld [smem:[#allocation0]]
  $region30: #{tpu_custom_call.1} parent=0
    _
  %s8 = ssub.s32 1, %s6
  %s9 = scalar_select 0, %s8, %s6
  // Predicated region
  $region2: #{tpu_custom_call.1} parent=0 // pred_check
    _
  $region3: #{tpu_custom_call.1} parent=0 // pred_check_branch
    %11 = sbr.rel (0) target = $region5
  $region4: #{tpu_custom_call.1} parent=0 // pred_region
    _
  $region5: #{tpu_custom_call.1} parent=0 // pred_fallthru
    _
  // Predicated region
  $region6: #{tpu_custom_call.1} parent=0 // pred_check
    _
  $region7: #{tpu_custom_call.1} parent=0 // pred_check_branch
    %13 = sbr.rel (0) target = $region9
  $region8: #{tpu_custom_call.1} parent=0 // pred_region
    _
  $region9: #{tpu_custom_call.1} parent=0 // pred_fallthru
    _
  // Predicated region
  $region10: #{tpu_custom_call.1} parent=0 // pred_check
    _
  $region11: #{tpu_custom_call.1} parent=0 // pred_check_branch
    %15 = sbr.rel (0) target = $region13
  $region12: #{tpu_custom_call.1} parent=0 // pred_region
    _
  $region13: #{tpu_custom_call.1} parent=0 // pred_fallthru
    _
  // Predicated region
  $region14: #{tpu_custom_call.1} parent=0 // pred_check
    _
  $region15: #{tpu_custom_call.1} parent=0 // pred_check_branch
    %17 = sbr.rel (0) target = $region17
  $region16: #{tpu_custom_call.1} parent=0 // pred_region
    _
  $region17: #{tpu_custom_call.1} parent=0 // pred_fallthru
    _
  // Predicated region
  $region18: #{tpu_custom_call.1} parent=0 // pred_check
    _
  $region19: #{tpu_custom_call.1} parent=0 // pred_check_branch
    %19 = sbr.rel (0) target = $region21
  $region20: #{tpu_custom_call.1} parent=0 // pred_region
    _
  $region21: #{tpu_custom_call.1} parent=0 // pred_fallthru
    _
  %v20 = vld [vmem:[%s0] sm:$0xff]
  %v21 = vld [vmem:[%s1] sm:$0xff]
  %v22 = vld [vmem:[%s1 + $0x8] sm:$0xff]
  %v23 = vld [vmem:[%s2] sm:$0x1]
  %v25 = vlaneseq
  %v26 = vshrl.u32 %v25, 7
  %v27 = vsub.s32 0, %v26
  %v28 = vrot.slane %v23, %v27
  %vm30 = vcmask 130048
  %v32 = vsel %vm30, %v20, 0
  %34 = vmatprep.subr.mxu0 0.0
  %35 = vmatpush1.msra.mxu0 %v21
  %36 = vmatprep.subr.mxu0 0.0
  %37 = vmatpush1.msra.mxu0 %v22
  %38 = vmatprep.subr.mxu0 0.0
  %39 = vmatpush1.msra.mxu0 0.0
  %40 = vmatprep.subr.mxu0 0.0
  %41 = vmatpush1.msra.mxu0 0.0
  %42 = vmatprep.subr.mxu0 0.0
  %43 = vmatpush1.msra.mxu0 0.0
  %44 = vmatprep.subr.mxu0 0.0
  %45 = vmatpush1.msra.mxu0 0.0
  %46 = vmatprep.subr.mxu0 0.0
  %47 = vmatpush1.msra.mxu0 0.0
  %48 = vmatprep.subr.mxu0 0.0
  %49 = vmatpush1.msra.mxu0 0.0
  %50 = vmatprep.subr.mxu0 0.0
  %51 = vmatpush1.msra.mxu0 0.0
  %52 = vmatprep.subr.mxu0 0.0
  %53 = vmatpush1.msra.mxu0 0.0
  %54 = vmatprep.subr.mxu0 0.0
  %55 = vmatpush1.msra.mxu0 0.0
  %56 = vmatprep.subr.mxu0 0.0
  %57 = vmatpush1.msra.mxu0 0.0
  %58 = vmatprep.subr.mxu0 0.0
  %59 = vmatpush1.msra.mxu0 0.0
  %60 = vmatprep.subr.mxu0 0.0
  %61 = vmatpush1.msra.mxu0 0.0
  %62 = vmatprep.subr.mxu0 0.0
  %63 = vmatpush1.msra.mxu0 0.0
  %64 = vmatprep.subr.mxu0 0.0
  %65 = vmatpush1.msra.mxu0 0.0
  %66 = vmatprep.subr.mxu0 0.0
  %67 = vmatpush1.msra.mxu0 0.0
  %68 = vmatprep.subr.mxu0 0.0
  %69 = vmatpush1.msra.mxu0 0.0
  %70 = vmatprep.subr.mxu0 0.0
  %71 = vmatpush1.msra.mxu0 0.0
  %72 = vmatprep.subr.mxu0 0.0
  %73 = vmatpush1.msra.mxu0 0.0
  %74 = vmatprep.subr.mxu0 0.0
  %75 = vmatpush1.msra.mxu0 0.0
  %76 = vmatprep.subr.mxu0 0.0
  %77 = vmatpush1.msra.mxu0 0.0
  %78 = vmatprep.subr.mxu0 0.0
  %79 = vmatpush1.msra.mxu0 0.0
  %80 = vmatprep.subr.mxu0 0.0
  %81 = vmatpush1.msra.mxu0 0.0
  %82 = vmatprep.subr.mxu0 0.0
  %83 = vmatpush1.msra.mxu0 0.0
  %84 = vmatprep.subr.mxu0 0.0
  %85 = vmatpush1.msra.mxu0 0.0
  %86 = vmatprep.subr.mxu0 0.0
  %87 = vmatpush1.msra.mxu0 0.0
  %88 = vmatprep.subr.mxu0 0.0
  %89 = vmatpush1.msra.mxu0 0.0
  %90 = vmatprep.subr.mxu0 0.0
  %91 = vmatpush1.msra.mxu0 0.0
  %92 = vmatprep.subr.mxu0 0.0
  %93 = vmatpush1.msra.mxu0 0.0
  %94 = vmatprep.subr.mxu0 0.0
  %95 = vmatpush1.msra.mxu0 0.0
  %96 = vmatprep.subr.mxu0 0.0
  %97 = vmatpush1.msra.mxu0 0.0
  %98 = vmatprep.mubr.f32.mxu0 0.0
  %99 = vmatmul.mubr.f32.gmra.mrb[0].mxu0 %v32
  %v100 = vpop.f32.mrb[0].mxu0
  %v101 = vadd.f32 %v28, %v100
  %v102 = vpop.f32.mrb[0].mxu0
  %103 = vdwg.mxu0
  %vm104 = vcmp.gt.f32.partialorder %v101, 1.0
  %v105 = vsel %vm104, 1, 0
  %v106 = vcvt.s32.f32 %v105
  %v107 = vld [vmem:[%s3] sm:$0xff]
  %v108 = vld [vmem:[%s3 + $0x8] sm:$0xff]
  %v109 = vld [vmem:[%s3 + $0x10] sm:$0xff]
  %v110 = vld [vmem:[%s3 + $0x18] sm:$0xff]
  %v111 = vld [vmem:[%s3 + $0x20] sm:$0xff]
  %v112 = vld [vmem:[%s3 + $0x28] sm:$0xff]
  %v113 = vld [vmem:[%s3 + $0x30] sm:$0xff]
  %v114 = vld [vmem:[%s3 + $0x38] sm:$0xff]
  %v115 = vld [vmem:[%s3 + $0x40] sm:$0xff]
  %v116 = vld [vmem:[%s3 + $0x48] sm:$0xff]
  %v117 = vld [vmem:[%s3 + $0x50] sm:$0xff]
  %v118 = vld [vmem:[%s3 + $0x58] sm:$0xff]
  %v119 = vld [vmem:[%s3 + $0x60] sm:$0xff]
  %v120 = vld [vmem:[%s3 + $0x68] sm:$0xff]
  %v121 = vld [vmem:[%s3 + $0x70] sm:$0xff]
  %v122 = vld [vmem:[%s3 + $0x78] sm:$0xff]
  %v123 = vld [vmem:[%s4] sm:$0x1]
  %v125 = vlaneseq
  %v126 = vshrl.u32 %v125, 7
  %v127 = vsub.s32 0, %v126
  %v128 = vrot.slane %v123, %v127
  %130 = vmatprep.subr.mxu0 0.0
  %131 = vmatpush1.msra.mxu0 %v107
  %132 = vmatprep.subr.mxu0 0.0
  %133 = vmatpush1.msra.mxu0 %v108
  %134 = vmatprep.subr.mxu0 0.0
  %135 = vmatpush1.msra.mxu0 %v109
  %136 = vmatprep.subr.mxu0 0.0
  %137 = vmatpush1.msra.mxu0 %v110
  %138 = vmatprep.subr.mxu0 0.0
  %139 = vmatpush1.msra.mxu0 %v111
  %140 = vmatprep.subr.mxu0 0.0
  %141 = vmatpush1.msra.mxu0 %v112
  %142 = vmatprep.subr.mxu0 0.0
  %143 = vmatpush1.msra.mxu0 %v113
  %144 = vmatprep.subr.mxu0 0.0
  %145 = vmatpush1.msra.mxu0 %v114
  %146 = vmatprep.subr.mxu0 0.0
  %147 = vmatpush1.msra.mxu0 %v115
  %148 = vmatprep.subr.mxu0 0.0
  %149 = vmatpush1.msra.mxu0 %v116
  %150 = vmatprep.subr.mxu0 0.0
  %151 = vmatpush1.msra.mxu0 %v117
  %152 = vmatprep.subr.mxu0 0.0
  %153 = vmatpush1.msra.mxu0 %v118
  %154 = vmatprep.subr.mxu0 0.0
  %155 = vmatpush1.msra.mxu0 %v119
  %156 = vmatprep.subr.mxu0 0.0
  %157 = vmatpush1.msra.mxu0 %v120
  %158 = vmatprep.subr.mxu0 0.0
  %159 = vmatpush1.msra.mxu0 %v121
  %160 = vmatprep.subr.mxu0 0.0
  %161 = vmatpush1.msra.mxu0 %v122
  %162 = vmatprep.subr.mxu0 0.0
  %163 = vmatpush1.msra.mxu0 0.0
  %164 = vmatprep.subr.mxu0 0.0
  %165 = vmatpush1.msra.mxu0 0.0
  %166 = vmatprep.subr.mxu0 0.0
  %167 = vmatpush1.msra.mxu0 0.0
  %168 = vmatprep.subr.mxu0 0.0
  %169 = vmatpush1.msra.mxu0 0.0
  %170 = vmatprep.subr.mxu0 0.0
  %171 = vmatpush1.msra.mxu0 0.0
  %172 = vmatprep.subr.mxu0 0.0
  %173 = vmatpush1.msra.mxu0 0.0
  %174 = vmatprep.subr.mxu0 0.0
  %175 = vmatpush1.msra.mxu0 0.0
  %176 = vmatprep.subr.mxu0 0.0
  %177 = vmatpush1.msra.mxu0 0.0
  %178 = vmatprep.subr.mxu0 0.0
  %179 = vmatpush1.msra.mxu0 0.0
  %180 = vmatprep.subr.mxu0 0.0
  %181 = vmatpush1.msra.mxu0 0.0
  %182 = vmatprep.subr.mxu0 0.0
  %183 = vmatpush1.msra.mxu0 0.0
  %184 = vmatprep.subr.mxu0 0.0
  %185 = vmatpush1.msra.mxu0 0.0
  %186 = vmatprep.subr.mxu0 0.0
  %187 = vmatpush1.msra.mxu0 0.0
  %188 = vmatprep.subr.mxu0 0.0
  %189 = vmatpush1.msra.mxu0 0.0
  %190 = vmatprep.subr.mxu0 0.0
  %191 = vmatpush1.msra.mxu0 0.0
  %192 = vmatprep.subr.mxu0 0.0
  %193 = vmatpush1.msra.mxu0 0.0
  %194 = vmatprep.mubr.f32.mxu0 0.0
  %195 = vmatmul.mubr.f32.gmra.mrb[0].mxu0 %v106
  %v196 = vpop.f32.mrb[0].mxu0
  %v197 = vadd.f32 %v128, %v196
  %v198 = vpop.f32.mrb[0].mxu0
  %199 = vdwg.mxu0
  %vm200 = vcmask 31744
  %201 = vst.msk [vmem:[%s5] sm:$0xff] %vm200, %v197
  // Predicated region
  $region22: #{tpu_custom_call.1} parent=0 // pred_check
    _
  $region23: #{tpu_custom_call.1} parent=0 // pred_check_branch
    %203 = sbr.rel (0) target = $region25
  $region24: #{tpu_custom_call.1} parent=0 // pred_region
    _
  $region25: #{tpu_custom_call.1} parent=0 // pred_fallthru
    _
  // Predicated region
  $region26: #{tpu_custom_call.1} parent=0 // pred_check
    _
  $region27: #{tpu_custom_call.1} parent=0 // pred_check_branch
    %205 = sbr.rel (0) target = $region29
  $region28: #{tpu_custom_call.1} parent=0 // pred_region
    _
  $region29: #{tpu_custom_call.1} parent=0 // pred_fallthru
    _

</llo_original>
